<compile_context>
chip_gen: v6e
topology: v6e:2x2x1
jax: 0.10.0
libtpu: 0.0.40
codegen_flags: <defaults>
</compile_context>

<pallas_src>
import jax
import jax.numpy as jnp
from jax.experimental import pallas as pl
from jax.experimental.pallas import tpu as pltpu

Z_DIM = 100
ZP = 128                 # z feature dim padded 100 -> 128 (lane-dense K)
H1, H2, H3 = 128, 256, 512
OUT = 28 * 28            # 784
OUTP = 896               # 784 -> 896 = 7*128 (lane-dense output / MXU N)
BN_EPS = 0.8
SLOPE = 0.2
TILE_B_MAX = 512         # batch tile (multiple of 256 -> full MXU rows on v6e/v7x)


def _round_up(x, m):
    return (x + m - 1) // m * m


def _leaky_relu(x):
    return jnp.where(x > 0, x, SLOPE * x)


def _bn_apply(x, s_ref, q_ref, g_ref, b_ref, inv_n):
    """Fold BN into one scale/shift FMA from accumulated sum / sum-of-squares."""
    mean = s_ref[...] * inv_n
    var = q_ref[...] * inv_n - mean * mean          # biased batch variance
    scale = g_ref[...] * jax.lax.rsqrt(var + BN_EPS)
    shift = b_ref[...] - mean * scale
    return x * scale + shift


def _accumulate_stats(i, nvalid, act, s_ref, q_ref):
    """Masked (valid rows only) sum / sumsq accumulation across batch tiles."""
    tile_b = act.shape[0]
    rows = i * tile_b + jax.lax.broadcasted_iota(jnp.int32, act.shape, 0)
    a = jnp.where(rows < nvalid, act, 0.0)
    s_ref[...] += jnp.sum(a, axis=0, keepdims=True)
    q_ref[...] += jnp.sum(a * a, axis=0, keepdims=True)


# ---------------- Stage 1: Linear(100->128) + LReLU + Linear(128->256) ----------------
def stage1_kernel(n_ref, z_ref, w1_ref, b1_ref, w2_ref, b2_ref,
                  a2_ref, s2_ref, q2_ref):
    i = pl.program_id(0)

    @pl.when(i == 0)
    def _():
        s2_ref[...] = jnp.zeros_like(s2_ref)
        q2_ref[...] = jnp.zeros_like(q2_ref)

    h1 = jnp.dot(z_ref[...].astype(jnp.bfloat16), w1_ref[...],
                 preferred_element_type=jnp.float32) + b1_ref[...]
    h1 = _leaky_relu(h1)
    a2 = jnp.dot(h1.astype(jnp.bfloat16), w2_ref[...],
                 preferred_element_type=jnp.float32) + b2_ref[...]
    a2_ref[...] = a2
    _accumulate_stats(i, n_ref[0], a2, s2_ref, q2_ref)


# ---------------- Stage 2: BN(256) + LReLU + Linear(256->512) ----------------
def stage2_kernel(n_ref, a2_ref, s2_ref, q2_ref, g2_ref, be2_ref,
                  w3_ref, b3_ref, a3_ref, s3_ref, q3_ref):
    i = pl.program_id(0)

    @pl.when(i == 0)
    def _():
        s3_ref[...] = jnp.zeros_like(s3_ref)
        q3_ref[...] = jnp.zeros_like(q3_ref)

    inv_n = 1.0 / n_ref[0].astype(jnp.float32)
    h2 = _bn_apply(a2_ref[...], s2_ref, q2_ref, g2_ref, be2_ref, inv_n)
    h2 = _leaky_relu(h2)
    a3 = jnp.dot(h2.astype(jnp.bfloat16), w3_ref[...],
                 preferred_element_type=jnp.float32) + b3_ref[...]
    a3_ref[...] = a3
    _accumulate_stats(i, n_ref[0], a3, s3_ref, q3_ref)


# ---------------- Stage 3: BN(512) + LReLU + Linear(512->896) + Tanh ----------------
def stage3_kernel(n_ref, a3_ref, s3_ref, q3_ref, g3_ref, be3_ref,
                  w4_ref, b4_ref, out_ref):
    inv_n = 1.0 / n_ref[0].astype(jnp.float32)
    h3 = _bn_apply(a3_ref[...], s3_ref, q3_ref, g3_ref, be3_ref, inv_n)
    h3 = _leaky_relu(h3)
    y = jnp.dot(h3.astype(jnp.bfloat16), w4_ref[...],
                preferred_element_type=jnp.float32) + b4_ref[...]
    out_ref[...] = jnp.tanh(y)


# ---------------- Parameters ----------------
def init_params(key):
    """PyTorch-like uniform fan-in init; Linear weights in (in, out) layout."""
    def linear(key, fan_in, fan_out):
        k1, k2 = jax.random.split(key)
        bound = 1.0 / jnp.sqrt(fan_in)
        w = jax.random.uniform(k1, (fan_in, fan_out), jnp.float32, -bound, bound)
        b = jax.random.uniform(k2, (1, fan_out), jnp.float32, -bound, bound)
        return w, b

    keys = jax.random.split(key, 4)
    w1, b1 = linear(keys[0], Z_DIM, H1)
    w2, b2 = linear(keys[1], H1, H2)
    w3, b3 = linear(keys[2], H2, H3)
    w4, b4 = linear(keys[3], H3, OUT)
    g2, be2 = jnp.ones((1, H2), jnp.float32), jnp.zeros((1, H2), jnp.float32)
    g3, be3 = jnp.ones((1, H3), jnp.float32), jnp.zeros((1, H3), jnp.float32)
    return (w1, b1, w2, b2, g2, be2, w3, b3, g3, be3, w4, b4)


def prepare_params(params):
    """Pad to lane-aligned shapes and store matmul weights in bf16 (done once)."""
    w1, b1, w2, b2, g2, be2, w3, b3, g3, be3, w4, b4 = params
    w1p = jnp.zeros((ZP, H1), jnp.float32).at[:Z_DIM, :].set(w1).astype(jnp.bfloat16)
    w4p = jnp.zeros((H3, OUTP), jnp.float32).at[:, :OUT].set(w4).astype(jnp.bfloat16)
    b4p = jnp.zeros((1, OUTP), jnp.float32).at[:, :OUT].set(b4)
    return (w1p, b1, w2.astype(jnp.bfloat16), b2, g2, be2,
            w3.astype(jnp.bfloat16), b3, g3, be3, w4p, b4p)


def _vmem_limit_bytes(tile_b):
    # double-buffered activation tiles of the largest stage + resident bf16
    # weights (2 buffers) + in-kernel f32/bf16 temporaries + headroom.
    acts = 2 * tile_b * (H3 + OUTP) * 4
    wts = 2 * 2 * (ZP * H1 + H1 * H2 + H2 * H3 + H3 * OUTP)
    tmps = 3 * tile_b * OUTP * 4
    need = acts + wts + tmps + (4 << 20)
    return int(min(max(need, 16 << 20), 48 << 20))


# ---------------- Forward wrapper ----------------
def generator_forward(z, prepared):
    (w1, b1, w2, b2, g2, be2, w3, b3, g3, be3, w4, b4) = prepared
    B = z.shape[0]
    tile_b = min(TILE_B_MAX, _round_up(B, 8))
    Bp = _round_up(B, tile_b)
    num_tiles = Bp // tile_b

    # Pad batch to tile multiple and z features 100 -> 128 (lane-dense K).
    zp = jnp.zeros((Bp, ZP), jnp.float32).at[:B, :Z_DIM].set(z.astype(jnp.float32))
    nvalid = jnp.array([B], jnp.int32)       # scalar-prefetched valid-row count

    batch = lambda shape: pl.BlockSpec(shape, lambda i, n: (i, 0))
    const = lambda shape: pl.BlockSpec(shape, lambda i, n: (0, 0))
    vlim = _vmem_limit_bytes(tile_b)

    # Stage 1 ("arbitrary": stats accumulators stay resident across tiles).
    a2, s2, q2 = pl.pallas_call(
        stage1_kernel,
        grid_spec=pltpu.PrefetchScalarGridSpec(
            num_scalar_prefetch=1,
            grid=(num_tiles,),
            in_specs=[batch((tile_b, ZP)), const((ZP, H1)), const((1, H1)),
                      const((H1, H2)), const((1, H2))],
            out_specs=[batch((tile_b, H2)), const((1, H2)), const((1, H2))],
        ),
        out_shape=(jax.ShapeDtypeStruct((Bp, H2), jnp.float32),
                   jax.ShapeDtypeStruct((1, H2), jnp.float32),
                   jax.ShapeDtypeStruct((1, H2), jnp.float32)),
        compiler_params=pltpu.CompilerParams(
            dimension_semantics=("arbitrary",), vmem_limit_bytes=vlim),
    )(nvalid, zp, w1, b1, w2, b2)

    # Stage 2 ("arbitrary": stats accumulators stay resident across tiles).
    a3, s3, q3 = pl.pallas_call(
        stage2_kernel,
        grid_spec=pltpu.PrefetchScalarGridSpec(
            num_scalar_prefetch=1,
            grid=(num_tiles,),
            in_specs=[batch((tile_b, H2)), const((1, H2)), const((1, H2)),
                      const((1, H2)), const((1, H2)),
                      const((H2, H3)), const((1, H3))],
            out_specs=[batch((tile_b, H3)), const((1, H3)), const((1, H3))],
        ),
        out_shape=(jax.ShapeDtypeStruct((Bp, H3), jnp.float32),
                   jax.ShapeDtypeStruct((1, H3), jnp.float32),
                   jax.ShapeDtypeStruct((1, H3), jnp.float32)),
        compiler_params=pltpu.CompilerParams(
            dimension_semantics=("arbitrary",), vmem_limit_bytes=vlim),
    )(nvalid, a2, s2, q2, g2, be2, w3, b3)

    # Stage 3: no cross-tile dependence -> "parallel" batch axis (v7x: 2 TCs).
    outp = pl.pallas_call(
        stage3_kernel,
        grid_spec=pltpu.PrefetchScalarGridSpec(
            num_scalar_prefetch=1,
            grid=(num_tiles,),
            in_specs=[batch((tile_b, H3)), const((1, H3)), const((1, H3)),
                      const((1, H3)), const((1, H3)),
                      const((H3, OUTP)), const((1, OUTP))],
            out_specs=[batch((tile_b, OUTP))],
        ),
        out_shape=(jax.ShapeDtypeStruct((Bp, OUTP), jnp.float32),),
        compiler_params=pltpu.CompilerParams(
            dimension_semantics=("parallel",), vmem_limit_bytes=vlim),
    )(nvalid, a3, s3, q3, g3, be3, w4, b4)[0]

    # Strip batch/lane padding; PyTorch: x.view(-1, 1, 28, 28).
    return outp[:B, :OUT].reshape(B, 1, 28, 28)


# ---------------- Pure-JAX reference (same bf16-rounded weights) ----------------
def reference_forward(z, prepared):
    w1, b1, w2, b2, g2, be2, w3, b3, g3, be3, w4, b4 = prepared

    def bn(x, g, b):
        m = jnp.mean(x, axis=0, keepdims=True)
        v = jnp.mean(x * x, axis=0, keepdims=True) - m * m
        return (x - m) * jax.lax.rsqrt(v + BN_EPS) * g + b

    zp = jnp.pad(z.astype(jnp.float32), ((0, 0), (0, ZP - Z_DIM)))
    h = _leaky_relu(zp @ w1.astype(jnp.float32) + b1)
    h = _leaky_relu(bn(h @ w2.astype(jnp.float32) + b2, g2, be2))
    h = _leaky_relu(bn(h @ w3.astype(jnp.float32) + b3, g3, be3))
    y = jnp.tanh(h @ w4.astype(jnp.float32) + b4)
    return y[:, :OUT].reshape(-1, 1, 28, 28)


if __name__ == "__main__":
    key = jax.random.PRNGKey(0)
    pkey, zkey = jax.random.split(key)
    params = init_params(pkey)
    prepared = prepare_params(params)

    B = 64
    z = jax.random.normal(zkey, (B, Z_DIM), jnp.float32)

    out = generator_forward(z, prepared)
    out = jax.block_until_ready(out)
    assert out.shape == (B, 1, 28, 28), out.shape
    assert bool(jnp.all(jnp.isfinite(out)))

    ref = reference_forward(z, prepared)
    err = float(jnp.max(jnp.abs(out - ref)))
    assert err < 3e-2, f"max |err| vs reference = {err}"
    print("KERNEL_OK")
</pallas_src>

<mosaic_0001>
module attributes {stable_mosaic.version = 11 : i64} {
  func.func @stage1_kernel(%arg0: i32, %arg1: memref<1xi32, #tpu.memory_space<smem>>, %arg2: memref<64x128xf32, #tpu.memory_space<vmem>>, %arg3: memref<128x128xbf16, #tpu.memory_space<vmem>>, %arg4: memref<1x128xf32, #tpu.memory_space<vmem>>, %arg5: memref<128x256xbf16, #tpu.memory_space<vmem>>, %arg6: memref<1x256xf32, #tpu.memory_space<vmem>>, %arg7: memref<64x256xf32, #tpu.memory_space<vmem>>, %arg8: memref<1x256xf32, #tpu.memory_space<vmem>>, %arg9: memref<1x256xf32, #tpu.memory_space<vmem>>) attributes {dimension_semantics = [#tpu.dimension_semantics<arbitrary>], iteration_bounds = array<i64: 1>, scalar_prefetch = 1 : i64, scratch_operands = 0 : i64, tpu.core_type = #tpu.core_type<tc>, window_params = [{transform_indices = @transform_0, window_bounds = array<i64: 64, 128>}, {pipeline_mode = #tpu.pipeline_mode<synchronous>, transform_indices = @transform_1, window_bounds = array<i64: 128, 128>}, {pipeline_mode = #tpu.pipeline_mode<synchronous>, transform_indices = @transform_2, window_bounds = array<i64: 1, 128>}, {pipeline_mode = #tpu.pipeline_mode<synchronous>, transform_indices = @transform_3, window_bounds = array<i64: 128, 256>}, {pipeline_mode = #tpu.pipeline_mode<synchronous>, transform_indices = @transform_4, window_bounds = array<i64: 1, 256>}, {transform_indices = @transform_5, window_bounds = array<i64: 64, 256>}, {pipeline_mode = #tpu.pipeline_mode<synchronous>, transform_indices = @transform_6, window_bounds = array<i64: 1, 256>}, {pipeline_mode = #tpu.pipeline_mode<synchronous>, transform_indices = @transform_7, window_bounds = array<i64: 1, 256>}]} {
    %c0_i32 = arith.constant 0 : i32
    %0 = arith.cmpi eq, %arg0, %c0_i32 : i32
    %1 = arith.extui %0 : i1 to i32
    %c0_i32_0 = arith.constant 0 : i32
    %2 = arith.cmpi ne, %1, %c0_i32_0 : i32
    scf.if %2 {
      %cst_27 = arith.constant 0.000000e+00 : f32
      %42 = vector.broadcast %cst_27 : f32 to vector<1x256xf32>
      %c0_28 = arith.constant 0 : index
      %c0_29 = arith.constant 0 : index
      %43 = vector.load %arg8[%c0_28, %c0_29] : memref<1x256xf32, #tpu.memory_space<vmem>>, vector<1x256xf32>
      tpu.vector_store %arg8[%c0_28, %c0_29], %42 {strides = array<i32>} : memref<1x256xf32, #tpu.memory_space<vmem>>, vector<1x256xf32>,
      %cst_30 = arith.constant 0.000000e+00 : f32
      %44 = vector.broadcast %cst_30 : f32 to vector<1x256xf32>
      %c0_31 = arith.constant 0 : index
      %c0_32 = arith.constant 0 : index
      %45 = vector.load %arg9[%c0_31, %c0_32] : memref<1x256xf32, #tpu.memory_space<vmem>>, vector<1x256xf32>
      tpu.vector_store %arg9[%c0_31, %c0_32], %44 {strides = array<i32>} : memref<1x256xf32, #tpu.memory_space<vmem>>, vector<1x256xf32>,
    } else {
    }
    %c0 = arith.constant 0 : index
    %c0_1 = arith.constant 0 : index
    %3 = vector.load %arg2[%c0, %c0_1] : memref<64x128xf32, #tpu.memory_space<vmem>>, vector<64x128xf32>
    %4 = arith.truncf %3 : vector<64x128xf32> to vector<64x128xbf16>
    %c0_2 = arith.constant 0 : index
    %c0_3 = arith.constant 0 : index
    %5 = vector.load %arg3[%c0_2, %c0_3] : memref<128x128xbf16, #tpu.memory_space<vmem>>, vector<128x128xbf16>
    %cst = arith.constant dense<0.000000e+00> : vector<64x128xf32>
    %6 = tpu.matmul %4, %5, %cst {dimension_numbers = #tpu.dot_dimension_numbers<[1], [0], [0], [1], [0, 0, 1, 1], [], []>} : vector<64x128xbf16>, vector<128x128xbf16>, vector<64x128xf32> -> vector<64x128xf32>
    %c0_4 = arith.constant 0 : index
    %c0_5 = arith.constant 0 : index
    %7 = vector.load %arg4[%c0_4, %c0_5] : memref<1x128xf32, #tpu.memory_space<vmem>>, vector<1x128xf32>
    %8 = vector.broadcast %7 : vector<1x128xf32> to vector<64x128xf32>
    %9 = arith.addf %6, %8 : vector<64x128xf32>
    %cst_6 = arith.constant 0.000000e+00 : f32
    %10 = vector.broadcast %cst_6 : f32 to vector<64x128xf32>
    %11 = arith.cmpf ogt, %9, %10 : vector<64x128xf32>
    %cst_7 = arith.constant 2.000000e-01 : f32
    %12 = vector.broadcast %cst_7 : f32 to vector<64x128xf32>
    %13 = arith.mulf %12, %9 : vector<64x128xf32>
    %14 = arith.select %11, %9, %13 : vector<64x128xi1>, vector<64x128xf32>
    %15 = arith.truncf %14 : vector<64x128xf32> to vector<64x128xbf16>
    %c0_8 = arith.constant 0 : index
    %c0_9 = arith.constant 0 : index
    %16 = vector.load %arg5[%c0_8, %c0_9] : memref<128x256xbf16, #tpu.memory_space<vmem>>, vector<128x256xbf16>
    %cst_10 = arith.constant dense<0.000000e+00> : vector<64x256xf32>
    %17 = tpu.matmul %15, %16, %cst_10 {dimension_numbers = #tpu.dot_dimension_numbers<[1], [0], [0], [1], [0, 0, 1, 1], [], []>} : vector<64x128xbf16>, vector<128x256xbf16>, vector<64x256xf32> -> vector<64x256xf32>
    %c0_11 = arith.constant 0 : index
    %c0_12 = arith.constant 0 : index
    %18 = vector.load %arg6[%c0_11, %c0_12] : memref<1x256xf32, #tpu.memory_space<vmem>>, vector<1x256xf32>
    %19 = vector.broadcast %18 : vector<1x256xf32> to vector<64x256xf32>
    %20 = arith.addf %17, %19 : vector<64x256xf32>
    %c0_13 = arith.constant 0 : index
    %c0_14 = arith.constant 0 : index
    %21 = vector.load %arg7[%c0_13, %c0_14] : memref<64x256xf32, #tpu.memory_space<vmem>>, vector<64x256xf32>
    tpu.vector_store %arg7[%c0_13, %c0_14], %20 {strides = array<i32>} : memref<64x256xf32, #tpu.memory_space<vmem>>, vector<64x256xf32>,
    %c0_15 = arith.constant 0 : index
    %22 = memref.load %arg1[%c0_15] : memref<1xi32, #tpu.memory_space<smem>>
    %c64_i32 = arith.constant 64 : i32
    %23 = arith.muli %arg0, %c64_i32 : i32
    %24 = tpu.iota {dimensions = array<i32: 0>} : vector<64x256xi32>
    %25 = vector.broadcast %23 : i32 to vector<64x256xi32>
    %26 = arith.addi %25, %24 : vector<64x256xi32>
    %27 = vector.broadcast %22 : i32 to vector<64x256xi32>
    %28 = arith.cmpi slt, %26, %27 : vector<64x256xi32>
    %cst_16 = arith.constant 0.000000e+00 : f32
    %29 = vector.broadcast %cst_16 : f32 to vector<64x256xf32>
    %30 = arith.select %28, %20, %29 : vector<64x256xi1>, vector<64x256xf32>
    %c0_17 = arith.constant 0 : index
    %c0_18 = arith.constant 0 : index
    %31 = vector.load %arg8[%c0_17, %c0_18] : memref<1x256xf32, #tpu.memory_space<vmem>>, vector<1x256xf32>
    %cst_19 = arith.constant dense<0.000000e+00> : vector<256xf32>
    %32 = vector.multi_reduction <add>, %30, %cst_19 [0] : vector<64x256xf32> to vector<256xf32>
    %33 = vector.shape_cast %32 : vector<256xf32> to vector<1x256xf32>
    %34 = arith.addf %31, %33 : vector<1x256xf32>
    %c0_20 = arith.constant 0 : index
    %c0_21 = arith.constant 0 : index
    %35 = vector.load %arg8[%c0_20, %c0_21] : memref<1x256xf32, #tpu.memory_space<vmem>>, vector<1x256xf32>
    tpu.vector_store %arg8[%c0_20, %c0_21], %34 {strides = array<i32>} : memref<1x256xf32, #tpu.memory_space<vmem>>, vector<1x256xf32>,
    %c0_22 = arith.constant 0 : index
    %c0_23 = arith.constant 0 : index
    %36 = vector.load %arg9[%c0_22, %c0_23] : memref<1x256xf32, #tpu.memory_space<vmem>>, vector<1x256xf32>
    %37 = arith.mulf %30, %30 : vector<64x256xf32>
    %cst_24 = arith.constant dense<0.000000e+00> : vector<256xf32>
    %38 = vector.multi_reduction <add>, %37, %cst_24 [0] : vector<64x256xf32> to vector<256xf32>
    %39 = vector.shape_cast %38 : vector<256xf32> to vector<1x256xf32>
    %40 = arith.addf %36, %39 : vector<1x256xf32>
    %c0_25 = arith.constant 0 : index
    %c0_26 = arith.constant 0 : index
    %41 = vector.load %arg9[%c0_25, %c0_26] : memref<1x256xf32, #tpu.memory_space<vmem>>, vector<1x256xf32>
    tpu.vector_store %arg9[%c0_25, %c0_26], %40 {strides = array<i32>} : memref<1x256xf32, #tpu.memory_space<vmem>>, vector<1x256xf32>,
    return
  }
  func.func @transform_0(%arg0: i32, %arg1: memref<1xi32, #tpu.memory_space<smem>>) -> (i32, i32) {
    %c0_i32 = arith.constant 0 : i32
    %c0_i32_0 = arith.constant 0 : i32
    return %arg0, %c0_i32 : i32, i32
  }
  func.func @transform_1(%arg0: i32, %arg1: memref<1xi32, #tpu.memory_space<smem>>) -> (i32, i32) {
    %c0_i32 = arith.constant 0 : i32
    %c0_i32_0 = arith.constant 0 : i32
    %c0_i32_1 = arith.constant 0 : i32
    return %c0_i32, %c0_i32_0 : i32, i32
  }
  func.func @transform_2(%arg0: i32, %arg1: memref<1xi32, #tpu.memory_space<smem>>) -> (i32, i32) {
    %c0_i32 = arith.constant 0 : i32
    %c0_i32_0 = arith.constant 0 : i32
    %c0_i32_1 = arith.constant 0 : i32
    return %c0_i32, %c0_i32_0 : i32, i32
  }
  func.func @transform_3(%arg0: i32, %arg1: memref<1xi32, #tpu.memory_space<smem>>) -> (i32, i32) {
    %c0_i32 = arith.constant 0 : i32
    %c0_i32_0 = arith.constant 0 : i32
    %c0_i32_1 = arith.constant 0 : i32
    return %c0_i32, %c0_i32_0 : i32, i32
  }
  func.func @transform_4(%arg0: i32, %arg1: memref<1xi32, #tpu.memory_space<smem>>) -> (i32, i32) {
    %c0_i32 = arith.constant 0 : i32
    %c0_i32_0 = arith.constant 0 : i32
    %c0_i32_1 = arith.constant 0 : i32
    return %c0_i32, %c0_i32_0 : i32, i32
  }
  func.func @transform_5(%arg0: i32, %arg1: memref<1xi32, #tpu.memory_space<smem>>) -> (i32, i32) {
    %c0_i32 = arith.constant 0 : i32
    %c0_i32_0 = arith.constant 0 : i32
    return %arg0, %c0_i32 : i32, i32
  }
  func.func @transform_6(%arg0: i32, %arg1: memref<1xi32, #tpu.memory_space<smem>>) -> (i32, i32) {
    %c0_i32 = arith.constant 0 : i32
    %c0_i32_0 = arith.constant 0 : i32
    %c0_i32_1 = arith.constant 0 : i32
    return %c0_i32, %c0_i32_0 : i32, i32
  }
  func.func @transform_7(%arg0: i32, %arg1: memref<1xi32, #tpu.memory_space<smem>>) -> (i32, i32) {
    %c0_i32 = arith.constant 0 : i32
    %c0_i32_0 = arith.constant 0 : i32
    %c0_i32_1 = arith.constant 0 : i32
    return %c0_i32, %c0_i32_0 : i32, i32
  }
}

</mosaic_0001>

<llo_original>
// kernel: tpu_custom_call.1
$region0: #{tpu_custom_call.1}
  #allocation0 [shape = 'u32[]', space=smem, size = 0x4, offset = 0x4, fixed_abs, tag = 'smem constant byte address 0x4 - core index']
  #allocation1 [shape = 'u32[144,128]{1,0:T(1,128)}', space=vmem, size = 0x12000, scoped, tag = 'internal scratch']
  #allocation2 [shape = 's32[1]{0}', space=sflag, size = 0x4, scoped, tag = 'scoped memory for tpu_custom_call.1']
  #allocation3 [shape = 's32[1]{0:T(128)S(6)}', space=smem, size = 0x200, scoped, tag = 'prefetched SMEM operand 0']
  %s0 = inlined_call_operand.<no memory space> [shape: s32[1], index: 0, kind: input, shape index: {}]
  %s1 = inlined_call_operand.hbm [shape: f32[64,128], index: 1, kind: input, shape index: {}]
  %s2 = inlined_call_operand.hbm [shape: bf16[128,128], index: 2, kind: input, shape index: {}]
  %s3 = inlined_call_operand.vmem [shape: f32[1,128], index: 3, kind: input, shape index: {}]
  %s4 = inlined_call_operand.hbm [shape: bf16[128,256], index: 4, kind: input, shape index: {}]
  %s5 = inlined_call_operand.vmem [shape: f32[1,256], index: 5, kind: input, shape index: {}]
  %s6 = inlined_call_operand.hbm [shape: f32[64,256], index: 6, kind: output, shape index: {0}]
  %s7 = inlined_call_operand.hbm [shape: f32[1,256], index: 7, kind: output, shape index: {1}]
  %s8 = inlined_call_operand.hbm [shape: f32[1,256], index: 8, kind: output, shape index: {2}]
  %9 = xla_tuple %s6, %s7, %s8
  %s10 = sld [smem:[#allocation0]]
  $region62: #{tpu_custom_call.1} parent=0
    _
  %s12 = ssub.s32 1, %s10
  %s13 = scalar_select 0, %s12, %s10
  %14 = sst [smem:[#allocation3]] %s0
  $region1: #{tpu_custom_call.1} parent=0
    #allocation4 [shape = 'u8[32768]{0}', space=vmem, size = 0x8000, scoped, tag = 'input window, operand 1, single buffered']
    #allocation5 [shape = 's32[1]{0}', space=sflag, size = 0x4, scoped, tag = 'scoped memory for tpu_custom_call.1']
    #allocation6 [shape = 's32[1]{0}', space=sflag, size = 0x4, scoped, tag = 'scoped memory for tpu_custom_call.1']
    #allocation7 [shape = 'u8[32768]{0}', space=vmem, size = 0x8000, scoped, tag = 'input window, operand 2, single buffered']
    #allocation8 [shape = 's32[1]{0}', space=sflag, size = 0x4, scoped, tag = 'scoped memory for tpu_custom_call.1']
    #allocation9 [shape = 'u8[65536]{0}', space=vmem, size = 0x10000, scoped, tag = 'input window, operand 4, single buffered']
    #allocation10 [shape = 'u8[65536]{0}', space=vmem, size = 0x10000, scoped, tag = 'output window, operand 0, single buffered']
    #allocation11 [shape = 'u8[1024]{0}', space=vmem, size = 0x400, scoped, tag = 'output window, operand 1, single buffered']
    #allocation12 [shape = 's32[1]{0}', space=sflag, size = 0x4, scoped, tag = 'scoped memory for tpu_custom_call.1']
    #allocation13 [shape = 'u8[1024]{0}', space=vmem, size = 0x400, scoped, tag = 'output window, operand 2, single buffered']
    %15 = vsyncpa [#allocation5], 0
    %16 = vsyncpa [#allocation8], 0
    %17 = vsyncpa [#allocation6], 0
    %18 = vsyncpa [#allocation12], 0
    // Predicated region
    $region2: #{tpu_custom_call.1} parent=1 // pred_check
      _
    $region3: #{tpu_custom_call.1} parent=1 // pred_check_branch
      %20 = sbr.rel (0) target = $region5
    $region4: #{tpu_custom_call.1} parent=1 // pred_region
      %s22 = ssub.s32 1024, 1024
      %23 = vsyncadd [#allocation5], %s22
      %s24 = sshll.u32 [#allocation4], 4
      %s25 = int_to_ptr.vmem [resolvable:$true] %s24
      %30 = dma.hbm_to_vmem [thread:$0]  %s1, 1024, %s25, [#allocation5], 128, 128, 8
    $region5: #{tpu_custom_call.1} parent=1 // pred_fallthru
      _
    // Predicated region
    $region6: #{tpu_custom_call.1} parent=1 // pred_check
      _
    $region7: #{tpu_custom_call.1} parent=1 // pred_check_branch
      %32 = sbr.rel (0) target = $region9
    $region8: #{tpu_custom_call.1} parent=1 // pred_region
      %s34 = ssub.s32 1024, 1024
      %35 = vsyncadd [#allocation8], %s34
      %s36 = sshll.u32 [#allocation7], 4
      %s37 = int_to_ptr.vmem [resolvable:$true] %s36
      %42 = dma.hbm_to_vmem [thread:$0]  %s2, 1024, %s37, [#allocation8], 64, 64, 4
    $region9: #{tpu_custom_call.1} parent=1 // pred_fallthru
      _
    // Predicated region
    $region10: #{tpu_custom_call.1} parent=1 // pred_check
      _
    $region11: #{tpu_custom_call.1} parent=1 // pred_check_branch
      %44 = sbr.rel (0) target = $region13
    $region12: #{tpu_custom_call.1} parent=1 // pred_region
      _
    $region13: #{tpu_custom_call.1} parent=1 // pred_fallthru
      _
    // Predicated region
    $region14: #{tpu_custom_call.1} parent=1 // pred_check
      _
    $region15: #{tpu_custom_call.1} parent=1 // pred_check_branch
      %46 = sbr.rel (0) target = $region17
    $region16: #{tpu_custom_call.1} parent=1 // pred_region
      %s48 = ssub.s32 2048, 2048
      %49 = vsyncadd [#allocation8], %s48
      %s50 = sshll.u32 [#allocation9], 4
      %s51 = int_to_ptr.vmem [resolvable:$true] %s50
      %56 = dma.hbm_to_vmem [thread:$0]  %s4, 2048, %s51, [#allocation8], 128, 128, 8
    $region17: #{tpu_custom_call.1} parent=1 // pred_fallthru
      _
    // Predicated region
    $region18: #{tpu_custom_call.1} parent=1 // pred_check
      _
    $region19: #{tpu_custom_call.1} parent=1 // pred_check_branch
      %58 = sbr.rel (0) target = $region21
    $region20: #{tpu_custom_call.1} parent=1 // pred_region
      _
    $region21: #{tpu_custom_call.1} parent=1 // pred_fallthru
      _
    // Predicated region
    $region22: #{tpu_custom_call.1} parent=1 // pred_check
      _
    $region23: #{tpu_custom_call.1} parent=1 // pred_check_branch
      %60 = sbr.rel (0) target = $region25
    $region24: #{tpu_custom_call.1} parent=1 // pred_region
      %61 = dma.done [#allocation5], 1024
    $region25: #{tpu_custom_call.1} parent=1 // pred_fallthru
      _
    // Predicated region
    $region26: #{tpu_custom_call.1} parent=1 // pred_check
      _
    $region27: #{tpu_custom_call.1} parent=1 // pred_check_branch
      %63 = sbr.rel (0) target = $region29
    $region28: #{tpu_custom_call.1} parent=1 // pred_region
      %64 = dma.done [#allocation8], 1024
    $region29: #{tpu_custom_call.1} parent=1 // pred_fallthru
      _
    // Predicated region
    $region30: #{tpu_custom_call.1} parent=1 // pred_check
      _
    $region31: #{tpu_custom_call.1} parent=1 // pred_check_branch
      %66 = sbr.rel (0) target = $region33
    $region32: #{tpu_custom_call.1} parent=1 // pred_region
      %67 = dma.done [#allocation8], 2048
    $region33: #{tpu_custom_call.1} parent=1 // pred_fallthru
      _
    %p69 = scmp.eq.s32.totalorder 0, 0
    // Predicated region
    $region34: #{tpu_custom_call.1} parent=1 // pred_check
      %p70 = pneg %p69
    $region35: #{tpu_custom_call.1} parent=1 // pred_check_branch
      %72 = sbr.rel (%p70) target = $region37
    $region36: #{tpu_custom_call.1} parent=1 // pred_region
      %v73 = vlaneseq
      %vm74 = vcmp.ge.s32.totalorder %v73, 0
      %vm75 = vcmp.lt.s32.totalorder %v73, 256
      %vm76 = vmand %vm74, %vm75
      %77 = vst.msk [vmem:[#allocation11] sm:$0x3] %vm76, 0.0
      %78 = vst.msk [vmem:[#allocation13] sm:$0x3] %vm76, 0.0
    $region37: #{tpu_custom_call.1} parent=1 // pred_fallthru
      _
    %v79 = vld [vmem:[#allocation4] sm:$0xff]
    %v80 = vld [vmem:[#allocation4 + $0x8] sm:$0xff]
    %v81 = vld [vmem:[#allocation4 + $0x10] sm:$0xff]
    %v82 = vld [vmem:[#allocation4 + $0x18] sm:$0xff]
    %v83 = vld [vmem:[#allocation4 + $0x20] sm:$0xff]
    %v84 = vld [vmem:[#allocation4 + $0x28] sm:$0xff]
    %v85 = vld [vmem:[#allocation4 + $0x30] sm:$0xff]
    %v86 = vld [vmem:[#allocation4 + $0x38] sm:$0xff]
    %v87 = vpack.c.bf16 %v80, %v79
    %v88 = vpack.c.bf16 %v82, %v81
    %v89 = vpack.c.bf16 %v84, %v83
    %v90 = vpack.c.bf16 %v86, %v85
    %v91 = vld [vmem:[#allocation7] sm:$0xf]
    %v92 = vld [vmem:[#allocation7 + $0x4] sm:$0xf]
    %v93 = vld [vmem:[#allocation7 + $0x8] sm:$0xf]
    %v94 = vld [vmem:[#allocation7 + $0xc] sm:$0xf]
    %v95 = vld [vmem:[#allocation7 + $0x10] sm:$0xf]
    %v96 = vld [vmem:[#allocation7 + $0x14] sm:$0xf]
    %v97 = vld [vmem:[#allocation7 + $0x18] sm:$0xf]
    %v98 = vld [vmem:[#allocation7 + $0x1c] sm:$0xf]
    %v99 = vld [vmem:[#allocation7 + $0x20] sm:$0xf]
    %v100 = vld [vmem:[#allocation7 + $0x24] sm:$0xf]
    %v101 = vld [vmem:[#allocation7 + $0x28] sm:$0xf]
    %v102 = vld [vmem:[#allocation7 + $0x2c] sm:$0xf]
    %v103 = vld [vmem:[#allocation7 + $0x30] sm:$0xf]
    %v104 = vld [vmem:[#allocation7 + $0x34] sm:$0xf]
    %v105 = vld [vmem:[#allocation7 + $0x38] sm:$0xf]
    %v106 = vld [vmem:[#allocation7 + $0x3c] sm:$0xf]
    %v107 = vld [vmem:[%s3] sm:$0x1]
    %v109 = vlaneseq
    %v110 = vshrl.u32 %v109, 7
    %v111 = vsub.s32 0, %v110
    %v112 = vrot.slane %v107, %v111
    %v130 = vunpack.c.l.b16 %v91
    %v131 = vunpack.c.l.b16 %v92
    %v132 = vunpack.c.l.b16 %v93
    %v133 = vunpack.c.l.b16 %v94
    %v134 = vunpack.c.l.b16 %v95
    %v135 = vunpack.c.l.b16 %v96
    %v136 = vunpack.c.l.b16 %v97
    %v137 = vunpack.c.l.b16 %v98
    %v138 = vunpack.c.l.b16 %v99
    %v139 = vunpack.c.l.b16 %v100
    %v140 = vunpack.c.l.b16 %v101
    %v141 = vunpack.c.l.b16 %v102
    %v142 = vunpack.c.l.b16 %v103
    %v143 = vunpack.c.l.b16 %v104
    %v144 = vunpack.c.l.b16 %v105
    %v145 = vunpack.c.l.b16 %v106
    %v146 = vpack.c.b16 %v131, %v130
    %v147 = vpack.c.b16 %v133, %v132
    %v148 = vpack.c.b16 %v135, %v134
    %v149 = vpack.c.b16 %v137, %v136
    %v150 = vpack.c.b16 %v139, %v138
    %v151 = vpack.c.b16 %v141, %v140
    %v152 = vpack.c.b16 %v143, %v142
    %v153 = vpack.c.b16 %v145, %v144
    %162 = vmatprep.subr.bf16.mxu0 0
    %163 = vmatpush1.bf16.msra.mxu0 %v153
    %164 = vmatprep.subr.bf16.mxu0 0
    %165 = vmatpush1.bf16.msra.mxu0 %v152
    %166 = vmatprep.subr.bf16.mxu0 0
    %167 = vmatpush1.bf16.msra.mxu0 %v151
    %168 = vmatprep.subr.bf16.mxu0 0
    %169 = vmatpush1.bf16.msra.mxu0 %v150
    %170 = vmatprep.subr.bf16.mxu0 0
    %171 = vmatpush1.bf16.msra.mxu0 %v149
    %172 = vmatprep.subr.bf16.mxu0 0
    %173 = vmatpush1.bf16.msra.mxu0 %v148
    %174 = vmatprep.subr.bf16.mxu0 0
    %175 = vmatpush1.bf16.msra.mxu0 %v147
    %176 = vmatprep.subr.bf16.mxu0 0
    %177 = vmatpush1.bf16.msra.mxu0 %v146
    %178 = vmatprep.subr.bf16.mxu0 0
    %179 = vmatpush2.bf16.msra.mxu0 0
    %180 = vmatprep.subr.bf16.mxu0 0
    %181 = vmatpush2.bf16.msra.mxu0 0
    %182 = vmatprep.subr.bf16.mxu0 0
    %183 = vmatpush2.bf16.msra.mxu0 0
    %184 = vmatprep.subr.bf16.mxu0 0
    %185 = vmatpush2.bf16.msra.mxu0 0
    %186 = vmatprep.subr.bf16.mxu0 0
    %187 = vmatpush2.bf16.msra.mxu0 0
    %188 = vmatprep.subr.bf16.mxu0 0
    %189 = vmatpush2.bf16.msra.mxu0 0
    %190 = vmatprep.subr.bf16.mxu0 0
    %191 = vmatpush2.bf16.msra.mxu0 0
    %192 = vmatprep.subr.bf16.mxu0 0
    %193 = vmatpush2.bf16.msra.mxu0 0
    %194 = vmatprep.mubr.bf16.mxu0 0
    %195 = vmatmul.mubr.bf16.gmra.mxu0 %v87
    %v196 = vpop.f32.mrf.mxu0
    %v197 = vadd.f32 %v112, %v196
    %v198 = vpop.f32.mrf.mxu0
    %v199 = vpop.f32.mrf.mxu0
    %v200 = vadd.f32 %v112, %v199
    %v201 = vpop.f32.mrf.mxu0
    %202 = vmatprep.mubr.bf16.mxu0 0
    %203 = vmatmul.mubr.bf16.gmra.mxu0 %v88
    %v204 = vpop.f32.mrf.mxu0
    %v205 = vadd.f32 %v112, %v204
    %v206 = vpop.f32.mrf.mxu0
    %v207 = vpop.f32.mrf.mxu0
    %v208 = vadd.f32 %v112, %v207
    %v209 = vpop.f32.mrf.mxu0
    %210 = vmatprep.mubr.bf16.mxu0 0
    %211 = vmatmul.mubr.bf16.gmra.mxu0 %v89
    %v212 = vpop.f32.mrf.mxu0
    %v213 = vadd.f32 %v112, %v212
    %v214 = vpop.f32.mrf.mxu0
    %v215 = vpop.f32.mrf.mxu0
    %v216 = vadd.f32 %v112, %v215
    %v217 = vpop.f32.mrf.mxu0
    %218 = vmatprep.mubr.bf16.mxu0 0
    %219 = vmatmul.mubr.bf16.gmra.mxu0 %v90
    %v220 = vpop.f32.mrf.mxu0
    %v221 = vadd.f32 %v112, %v220
    %v222 = vpop.f32.mrf.mxu0
    %v223 = vpop.f32.mrf.mxu0
    %v224 = vadd.f32 %v112, %v223
    %v225 = vpop.f32.mrf.mxu0
    %226 = vdwg.mxu0
    %vm227 = vcmp.gt.f32.partialorder %v197, 0.0
    %vm228 = vcmp.gt.f32.partialorder %v200, 0.0
    %vm229 = vcmp.gt.f32.partialorder %v205, 0.0
    %vm230 = vcmp.gt.f32.partialorder %v208, 0.0
    %vm231 = vcmp.gt.f32.partialorder %v213, 0.0
    %vm232 = vcmp.gt.f32.partialorder %v216, 0.0
    %vm233 = vcmp.gt.f32.partialorder %v221, 0.0
    %vm234 = vcmp.gt.f32.partialorder %v224, 0.0
    %v235 = vmul.f32 %v197, 0.2
    %v236 = vmul.f32 %v200, 0.2
    %v237 = vmul.f32 %v205, 0.2
    %v238 = vmul.f32 %v208, 0.2
    %v239 = vmul.f32 %v213, 0.2
    %v240 = vmul.f32 %v216, 0.2
    %v241 = vmul.f32 %v221, 0.2
    %v242 = vmul.f32 %v224, 0.2
    %v243 = vsel %vm227, %v197, %v235
    %v244 = vsel %vm228, %v200, %v236
    %v245 = vsel %vm229, %v205, %v237
    %v246 = vsel %vm230, %v208, %v238
    %v247 = vsel %vm231, %v213, %v239
    %v248 = vsel %vm232, %v216, %v240
    %v249 = vsel %vm233, %v221, %v241
    %v250 = vsel %vm234, %v224, %v242
    %v251 = vpack.c.bf16 %v244, %v243
    %v252 = vpack.c.bf16 %v246, %v245
    %v253 = vpack.c.bf16 %v248, %v247
    %v254 = vpack.c.bf16 %v250, %v249
    %v255 = vld [vmem:[#allocation9] sm:$0xff]
    %v256 = vld [vmem:[#allocation9 + $0x8] sm:$0xff]
    %v257 = vld [vmem:[#allocation9 + $0x10] sm:$0xff]
    %v258 = vld [vmem:[#allocation9 + $0x18] sm:$0xff]
    %v259 = vld [vmem:[#allocation9 + $0x20] sm:$0xff]
    %v260 = vld [vmem:[#allocation9 + $0x28] sm:$0xff]
    %v261 = vld [vmem:[#allocation9 + $0x30] sm:$0xff]
    %v262 = vld [vmem:[#allocation9 + $0x38] sm:$0xff]
    %v263 = vld [vmem:[#allocation9 + $0x40] sm:$0xff]
    %v264 = vld [vmem:[#allocation9 + $0x48] sm:$0xff]
    %v265 = vld [vmem:[#allocation9 + $0x50] sm:$0xff]
    %v266 = vld [vmem:[#allocation9 + $0x58] sm:$0xff]
    %v267 = vld [vmem:[#allocation9 + $0x60] sm:$0xff]
    %v268 = vld [vmem:[#allocation9 + $0x68] sm:$0xff]
    %v269 = vld [vmem:[#allocation9 + $0x70] sm:$0xff]
    %v270 = vld [vmem:[#allocation9 + $0x78] sm:$0xff]
    %v271 = vld [vmem:[%s5] sm:$0x3]
    %v273 = vlaneseq
    %v274 = vshrl.u32 %v273, 7
    %v275 = vsub.s32 0, %v274
    %v276 = vrot.slane %v271, %v275
    %v277 = vlaneseq
    %v278 = vshrl.u32 %v277, 7
    %v279 = vsub.s32 1, %v278
    %v280 = vrot.slane %v271, %v279
    %v299 = vunpack.c.l.b16 %v255
    %v300 = vunpack.c.h.b16 %v255
    %v301 = vunpack.c.l.b16 %v256
    %v302 = vunpack.c.h.b16 %v256
    %v303 = vunpack.c.l.b16 %v257
    %v304 = vunpack.c.h.b16 %v257
    %v305 = vunpack.c.l.b16 %v258
    %v306 = vunpack.c.h.b16 %v258
    %v307 = vunpack.c.l.b16 %v259
    %v308 = vunpack.c.h.b16 %v259
    %v309 = vunpack.c.l.b16 %v260
    %v310 = vunpack.c.h.b16 %v260
    %v311 = vunpack.c.l.b16 %v261
    %v312 = vunpack.c.h.b16 %v261
    %v313 = vunpack.c.l.b16 %v262
    %v314 = vunpack.c.h.b16 %v262
    %v315 = vunpack.c.l.b16 %v263
    %v316 = vunpack.c.h.b16 %v263
    %v317 = vunpack.c.l.b16 %v264
    %v318 = vunpack.c.h.b16 %v264
    %v319 = vunpack.c.l.b16 %v265
    %v320 = vunpack.c.h.b16 %v265
    %v321 = vunpack.c.l.b16 %v266
    %v322 = vunpack.c.h.b16 %v266
    %v323 = vunpack.c.l.b16 %v267
    %v324 = vunpack.c.h.b16 %v267
    %v325 = vunpack.c.l.b16 %v268
    %v326 = vunpack.c.h.b16 %v268
    %v327 = vunpack.c.l.b16 %v269
    %v328 = vunpack.c.h.b16 %v269
    %v329 = vunpack.c.l.b16 %v270
    %v330 = vunpack.c.h.b16 %v270
    %v331 = vpack.c.b16 %v301, %v299
    %v332 = vpack.c.b16 %v302, %v300
    %v333 = vpack.c.b16 %v305, %v303
    %v334 = vpack.c.b16 %v306, %v304
    %v335 = vpack.c.b16 %v309, %v307
    %v336 = vpack.c.b16 %v310, %v308
    %v337 = vpack.c.b16 %v313, %v311
    %v338 = vpack.c.b16 %v314, %v312
    %v339 = vpack.c.b16 %v317, %v315
    %v340 = vpack.c.b16 %v318, %v316
    %v341 = vpack.c.b16 %v321, %v319
    %v342 = vpack.c.b16 %v322, %v320
    %v343 = vpack.c.b16 %v325, %v323
    %v344 = vpack.c.b16 %v326, %v324
    %v345 = vpack.c.b16 %v329, %v327
    %v346 = vpack.c.b16 %v330, %v328
    %363 = vmatprep.subr.bf16.mxu0 %v346
    %364 = vmatpush1.bf16.msra.mxu0 %v345
    %365 = vmatprep.subr.bf16.mxu0 %v344
    %366 = vmatpush1.bf16.msra.mxu0 %v343
    %367 = vmatprep.subr.bf16.mxu0 %v342
    %368 = vmatpush1.bf16.msra.mxu0 %v341
    %369 = vmatprep.subr.bf16.mxu0 %v340
    %370 = vmatpush1.bf16.msra.mxu0 %v339
    %371 = vmatprep.subr.bf16.mxu0 %v338
    %372 = vmatpush1.bf16.msra.mxu0 %v337
    %373 = vmatprep.subr.bf16.mxu0 %v336
    %374 = vmatpush1.bf16.msra.mxu0 %v335
    %375 = vmatprep.subr.bf16.mxu0 %v334
    %376 = vmatpush1.bf16.msra.mxu0 %v333
    %377 = vmatprep.subr.bf16.mxu0 %v332
    %378 = vmatpush1.bf16.msra.mxu0 %v331
    %379 = vmatprep.subr.bf16.mxu0 0
    %380 = vmatpush2.bf16.msra.mxu0 0
    %381 = vmatprep.subr.bf16.mxu0 0
    %382 = vmatpush2.bf16.msra.mxu0 0
    %383 = vmatprep.subr.bf16.mxu0 0
    %384 = vmatpush2.bf16.msra.mxu0 0
    %385 = vmatprep.subr.bf16.mxu0 0
    %386 = vmatpush2.bf16.msra.mxu0 0
    %387 = vmatprep.subr.bf16.mxu0 0
    %388 = vmatpush2.bf16.msra.mxu0 0
    %389 = vmatprep.subr.bf16.mxu0 0
    %390 = vmatpush2.bf16.msra.mxu0 0
    %391 = vmatprep.subr.bf16.mxu0 0
    %392 = vmatpush2.bf16.msra.mxu0 0
    %393 = vmatprep.subr.bf16.mxu0 0
    %394 = vmatpush2.bf16.msra.mxu0 0
    %395 = vmatprep.mubr.bf16.mxu0 0
    %396 = vmatmul.mubr.bf16.gmra.mxu0 %v251
    %v397 = vpop.f32.mrf.mxu0
    %v398 = vadd.f32 %v276, %v397
    %v399 = vpop.f32.mrf.mxu0
    %v400 = vadd.f32 %v280, %v399
    %v401 = vpop.f32.mrf.mxu0
    %v402 = vadd.f32 %v276, %v401
    %v403 = vpop.f32.mrf.mxu0
    %v404 = vadd.f32 %v280, %v403
    %405 = vmatprep.mubr.bf16.mxu0 0
    %406 = vmatmul.mubr.bf16.gmra.mxu0 %v252
    %v407 = vpop.f32.mrf.mxu0
    %v408 = vadd.f32 %v276, %v407
    %v409 = vpop.f32.mrf.mxu0
    %v410 = vadd.f32 %v280, %v409
    %v411 = vpop.f32.mrf.mxu0
    %v412 = vadd.f32 %v276, %v411
    %v413 = vpop.f32.mrf.mxu0
    %v414 = vadd.f32 %v280, %v413
    %415 = vmatprep.mubr.bf16.mxu0 0
    %416 = vmatmul.mubr.bf16.gmra.mxu0 %v253
    %v417 = vpop.f32.mrf.mxu0
    %v418 = vadd.f32 %v276, %v417
    %v419 = vpop.f32.mrf.mxu0
    %v420 = vadd.f32 %v280, %v419
    %v421 = vpop.f32.mrf.mxu0
    %v422 = vadd.f32 %v276, %v421
    %v423 = vpop.f32.mrf.mxu0
    %v424 = vadd.f32 %v280, %v423
    %425 = vmatprep.mubr.bf16.mxu0 0
    %426 = vmatmul.mubr.bf16.gmra.mxu0 %v254
    %v427 = vpop.f32.mrf.mxu0
    %v428 = vadd.f32 %v276, %v427
    %v429 = vpop.f32.mrf.mxu0
    %v430 = vadd.f32 %v280, %v429
    %v431 = vpop.f32.mrf.mxu0
    %v432 = vadd.f32 %v276, %v431
    %v433 = vpop.f32.mrf.mxu0
    %v434 = vadd.f32 %v280, %v433
    %435 = vdwg.mxu0
    %436 = vst [vmem:[#allocation10] sm:$0xff] %v398
    %437 = vst [vmem:[#allocation10 + $0x8] sm:$0xff] %v400
    %438 = vst [vmem:[#allocation10 + $0x10] sm:$0xff] %v402
    %439 = vst [vmem:[#allocation10 + $0x18] sm:$0xff] %v404
    %440 = vst [vmem:[#allocation10 + $0x20] sm:$0xff] %v408
    %441 = vst [vmem:[#allocation10 + $0x28] sm:$0xff] %v410
    %442 = vst [vmem:[#allocation10 + $0x30] sm:$0xff] %v412
    %443 = vst [vmem:[#allocation10 + $0x38] sm:$0xff] %v414
    %444 = vst [vmem:[#allocation10 + $0x40] sm:$0xff] %v418
    %445 = vst [vmem:[#allocation10 + $0x48] sm:$0xff] %v420
    %446 = vst [vmem:[#allocation10 + $0x50] sm:$0xff] %v422
    %447 = vst [vmem:[#allocation10 + $0x58] sm:$0xff] %v424
    %448 = vst [vmem:[#allocation10 + $0x60] sm:$0xff] %v428
    %449 = vst [vmem:[#allocation10 + $0x68] sm:$0xff] %v430
    %450 = vst [vmem:[#allocation10 + $0x70] sm:$0xff] %v432
    %451 = vst [vmem:[#allocation10 + $0x78] sm:$0xff] %v434
    %s452 = sld [smem:[#allocation3]]
    %s453 = smul.u32 0, 64
    %v454 = vlaneseq
    %v455 = vshrl.u32 %v454, 7
    %v456 = vadd.s32 %v455, 8
    %v457 = vadd.s32 %v455, 16
    %v458 = vadd.s32 %v455, 24
    %v459 = vadd.s32 %v455, 32
    %v460 = vadd.s32 %v455, 40
    %v461 = vadd.s32 %v455, 48
    %v462 = vadd.s32 %v455, 56
    %v463 = vstv %s453
    %v464 = vadd.s32 %v463, %v455
    %v465 = vadd.s32 %v463, %v456
    %v466 = vadd.s32 %v463, %v457
    %v467 = vadd.s32 %v463, %v458
    %v468 = vadd.s32 %v463, %v459
    %v469 = vadd.s32 %v463, %v460
    %v470 = vadd.s32 %v463, %v461
    %v471 = vadd.s32 %v463, %v462
    %v472 = vstv %s452
    %vm473 = vcmp.lt.s32.totalorder %v464, %v472
    %vm474 = vcmp.lt.s32.totalorder %v465, %v472
    %vm475 = vcmp.lt.s32.totalorder %v466, %v472
    %vm476 = vcmp.lt.s32.totalorder %v467, %v472
    %vm477 = vcmp.lt.s32.totalorder %v468, %v472
    %vm478 = vcmp.lt.s32.totalorder %v469, %v472
    %vm479 = vcmp.lt.s32.totalorder %v470, %v472
    %vm480 = vcmp.lt.s32.totalorder %v471, %v472
    %v481 = vsel %vm473, %v398, 0.0
    %v482 = vsel %vm473, %v400, 0.0
    %v483 = vsel %vm474, %v402, 0.0
    %v484 = vsel %vm474, %v404, 0.0
    %v485 = vsel %vm475, %v408, 0.0
    %v486 = vsel %vm475, %v410, 0.0
    %v487 = vsel %vm476, %v412, 0.0
    %v488 = vsel %vm476, %v414, 0.0
    %v489 = vsel %vm477, %v418, 0.0
    %v490 = vsel %vm477, %v420, 0.0
    %v491 = vsel %vm478, %v422, 0.0
    %v492 = vsel %vm478, %v424, 0.0
    %v493 = vsel %vm479, %v428, 0.0
    %v494 = vsel %vm479, %v430, 0.0
    %v495 = vsel %vm480, %v432, 0.0
    %v496 = vsel %vm480, %v434, 0.0
    %v497 = vld [vmem:[#allocation11] sm:$0x3]
    %v498 = vadd.f32 %v481, %v483
    %v499 = vadd.f32 %v498, %v485
    %v500 = vadd.f32 %v499, %v487
    %v501 = vadd.f32 %v500, %v489
    %v502 = vadd.f32 %v501, %v491
    %v503 = vadd.f32 %v502, %v493
    %v504 = vadd.f32 %v503, %v495
    %v505 = vrot.slane %v504, 4
    %v506 = vadd.f32 %v504, %v505
    %v507 = vrot.slane %v506, 2
    %v508 = vadd.f32 %v506, %v507
    %v509 = vrot.slane %v508, 1
    %v510 = vadd.f32 %v508, %v509
    %v511 = vadd.f32 %v482, %v484
    %v512 = vadd.f32 %v511, %v486
    %v513 = vadd.f32 %v512, %v488
    %v514 = vadd.f32 %v513, %v490
    %v515 = vadd.f32 %v514, %v492
    %v516 = vadd.f32 %v515, %v494
    %v517 = vadd.f32 %v516, %v496
    %v518 = vrot.slane %v517, 4
    %v519 = vadd.f32 %v517, %v518
    %v520 = vrot.slane %v519, 2
    %v521 = vadd.f32 %v519, %v520
    %v522 = vrot.slane %v521, 1
    %v523 = vadd.f32 %v521, %v522
    %v526 = vcombine.low %v510, %v523
    %v528 = vunpack.c.l.s4 1966171168
    %v529 = vunpack.c.0.s8 %v528
    %v530 = vlaneseq
    %v531 = vshrl.u32 %v530, 7
    %v532 = vsub.s32 %v529, %v531
    %v533 = vrot.slane %v526, %v532
    %v535 = vunpack.c.l.s4 1966171168
    %v536 = vunpack.c.0.s8 %v535
    %v537 = vlaneseq
    %v538 = vshrl.u32 %v537, 7
    %v539 = vsub.s32 %v536, %v538
    %v540 = vrot.slane %v533, %v539
    %v542 = vadd.f32 %v497, %v540
    %v543 = vlaneseq
    %vm544 = vcmp.ge.s32.totalorder %v543, 0
    %vm545 = vcmp.lt.s32.totalorder %v543, 256
    %vm546 = vmand %vm544, %vm545
    %547 = vst.msk [vmem:[#allocation11] sm:$0x3] %vm546, %v542
    %v548 = vld [vmem:[#allocation13] sm:$0x3]
    %v549 = vmul.f32 %v481, %v481
    %v550 = vmul.f32 %v482, %v482
    %v551 = vmul.f32 %v483, %v483
    %v552 = vmul.f32 %v484, %v484
    %v553 = vmul.f32 %v485, %v485
    %v554 = vmul.f32 %v486, %v486
    %v555 = vmul.f32 %v487, %v487
    %v556 = vmul.f32 %v488, %v488
    %v557 = vmul.f32 %v489, %v489
    %v558 = vmul.f32 %v490, %v490
    %v559 = vmul.f32 %v491, %v491
    %v560 = vmul.f32 %v492, %v492
    %v561 = vmul.f32 %v493, %v493
    %v562 = vmul.f32 %v494, %v494
    %v563 = vmul.f32 %v495, %v495
    %v564 = vmul.f32 %v496, %v496
    %v565 = vadd.f32 %v549, %v551
    %v566 = vadd.f32 %v565, %v553
    %v567 = vadd.f32 %v566, %v555
    %v568 = vadd.f32 %v567, %v557
    %v569 = vadd.f32 %v568, %v559
    %v570 = vadd.f32 %v569, %v561
    %v571 = vadd.f32 %v570, %v563
    %v572 = vrot.slane %v571, 4
    %v573 = vadd.f32 %v571, %v572
    %v574 = vrot.slane %v573, 2
    %v575 = vadd.f32 %v573, %v574
    %v576 = vrot.slane %v575, 1
    %v577 = vadd.f32 %v575, %v576
    %v578 = vadd.f32 %v550, %v552
    %v579 = vadd.f32 %v578, %v554
    %v580 = vadd.f32 %v579, %v556
    %v581 = vadd.f32 %v580, %v558
    %v582 = vadd.f32 %v581, %v560
    %v583 = vadd.f32 %v582, %v562
    %v584 = vadd.f32 %v583, %v564
    %v585 = vrot.slane %v584, 4
    %v586 = vadd.f32 %v584, %v585
    %v587 = vrot.slane %v586, 2
    %v588 = vadd.f32 %v586, %v587
    %v589 = vrot.slane %v588, 1
    %v590 = vadd.f32 %v588, %v589
    %v593 = vcombine.low %v577, %v590
    %v595 = vunpack.c.l.s4 1966171168
    %v596 = vunpack.c.0.s8 %v595
    %v597 = vlaneseq
    %v598 = vshrl.u32 %v597, 7
    %v599 = vsub.s32 %v596, %v598
    %v600 = vrot.slane %v593, %v599
    %v602 = vunpack.c.l.s4 1966171168
    %v603 = vunpack.c.0.s8 %v602
    %v604 = vlaneseq
    %v605 = vshrl.u32 %v604, 7
    %v606 = vsub.s32 %v603, %v605
    %v607 = vrot.slane %v600, %v606
    %v609 = vadd.f32 %v548, %v607
    %610 = vst.msk [vmem:[#allocation13] sm:$0x3] %vm546, %v609
    // Predicated region
    $region38: #{tpu_custom_call.1} parent=1 // pred_check
      _
    $region39: #{tpu_custom_call.1} parent=1 // pred_check_branch
      %612 = sbr.rel (0) target = $region41
    $region40: #{tpu_custom_call.1} parent=1 // pred_region
      %s614 = ssub.s32 2048, 2048
      %615 = vsyncadd [#allocation6], %s614
      %s616 = sshll.u32 [#allocation10], 4
      %s617 = int_to_ptr.vmem [resolvable:$true] %s616
      %622 = dma.vmem_to_hbm [thread:$0]  %s617, 2048, %s6, [#allocation6], 256, 256, 16
    $region41: #{tpu_custom_call.1} parent=1 // pred_fallthru
      _
    // Predicated region
    $region42: #{tpu_custom_call.1} parent=1 // pred_check
      _
    $region43: #{tpu_custom_call.1} parent=1 // pred_check_branch
      %624 = sbr.rel (0) target = $region45
    $region44: #{tpu_custom_call.1} parent=1 // pred_region
      %s626 = ssub.s32 32, 32
      %627 = vsyncadd [#allocation12], %s626
      %s629 = sshll.u32 [#allocation11], 4
      %s630 = int_to_ptr.vmem [resolvable:$true] %s629
      %632 = dma.vmem_to_hbm [thread:$0]  %s630, 32, %s7, [#allocation12]
    $region45: #{tpu_custom_call.1} parent=1 // pred_fallthru
      _
    // Predicated region
    $region46: #{tpu_custom_call.1} parent=1 // pred_check
      _
    $region47: #{tpu_custom_call.1} parent=1 // pred_check_branch
      %634 = sbr.rel (0) target = $region49
    $region48: #{tpu_custom_call.1} parent=1 // pred_region
      %s636 = ssub.s32 32, 32
      %637 = vsyncadd [#allocation12], %s636
      %s639 = sshll.u32 [#allocation13], 4
      %s640 = int_to_ptr.vmem [resolvable:$true] %s639
      %642 = dma.vmem_to_hbm [thread:$0]  %s640, 32, %s8, [#allocation12]
    $region49: #{tpu_custom_call.1} parent=1 // pred_fallthru
      _
    // Predicated region
    $region50: #{tpu_custom_call.1} parent=1 // pred_check
      _
    $region51: #{tpu_custom_call.1} parent=1 // pred_check_branch
      %644 = sbr.rel (0) target = $region53
    $region52: #{tpu_custom_call.1} parent=1 // pred_region
      %645 = dma.done [#allocation6], 2048
    $region53: #{tpu_custom_call.1} parent=1 // pred_fallthru
      _
    // Predicated region
    $region54: #{tpu_custom_call.1} parent=1 // pred_check
      _
    $region55: #{tpu_custom_call.1} parent=1 // pred_check_branch
      %647 = sbr.rel (0) target = $region57
    $region56: #{tpu_custom_call.1} parent=1 // pred_region
      %648 = dma.done [#allocation12], 32
    $region57: #{tpu_custom_call.1} parent=1 // pred_fallthru
      _
    // Predicated region
    $region58: #{tpu_custom_call.1} parent=1 // pred_check
      _
    $region59: #{tpu_custom_call.1} parent=1 // pred_check_branch
      %650 = sbr.rel (0) target = $region61
    $region60: #{tpu_custom_call.1} parent=1 // pred_region
      %651 = dma.done [#allocation12], 32
    $region61: #{tpu_custom_call.1} parent=1 // pred_fallthru
      _
    %652 = vsyncpa [#allocation5], 1
    %653 = vsyncpa [#allocation8], 1
    %654 = vsyncpa [#allocation6], 1
    %655 = vsyncpa [#allocation12], 1

</llo_original>
